<compile_context>
chip_gen: v6e
topology: v6e:2x2x1
jax: 0.10.0
libtpu: 0.0.40
codegen_flags: <defaults>
</compile_context>

<pallas_src>
import jax
import jax.numpy as jnp
from jax import lax
from jax.experimental import pallas as pl
from jax.experimental.pallas import tpu as pltpu  # noqa: F401  (TPU backend)


# --------------------------------------------------------------------------
# Fused kernel: mask -> (conv1d + skip mix) -> attention -> classifier -> lsm
# --------------------------------------------------------------------------
def conv_att_kernel(x_ref, mcol_ref, mrow_ref, wmix_ref, bmix_ref,
                    qlin_ref, woutm_ref, qout_ref, wcls_ref, bcls_ref,
                    out_ref):
    B, S, D = x_ref.shape
    A = qlin_ref.shape[0]
    K = wmix_ref.shape[0] // D                      # conv kernel size (5)
    half = K // 2
    N = B * S

    mcol = mcol_ref[...]                            # (N, 1) token mask (rows)
    xm2d = x_ref[...].reshape(N, D) * mcol          # masked input  (N, D)
    xm3 = xm2d.reshape(B, S, D)

    # ---- Conv1d(k=5, pad=2) + skip mix as ONE im2col matmul ----------------
    # K sequence-shifted, zero-padded copies of the masked input, concatenated
    # along the feature axis.  The weight slab already carries sw*W_conv with
    # (1-sw)*I in its centre block and sw*b_conv as bias, so one matmul gives
    # (1-sw)*inp + sw*conv directly (then re-masked like the PyTorch model).
    taps = []
    for k in range(K):
        d = k - half
        if d < 0:
            t = jnp.concatenate(
                [jnp.zeros((B, -d, D), jnp.float32), xm3[:, :S + d, :]], axis=1)
        elif d == 0:
            t = xm3
        else:
            t = jnp.concatenate(
                [xm3[:, d:, :], jnp.zeros((B, d, D), jnp.float32)], axis=1)
        taps.append(t)
    im2col = jnp.concatenate(taps, axis=2).reshape(N, K * D)        # (N, K*D)

    mix2d = (jnp.dot(im2col, wmix_ref[...],
                     preferred_element_type=jnp.float32)
             + bmix_ref[...]) * mcol                                # (N, D)

    # ---- Attention 'general': one batched score matmul ---------------------
    qlin = qlin_ref[...]                                            # (A, D)
    scores = lax.dot_general(qlin, mix2d, (((1,), (1,)), ((), ())),
                             preferred_element_type=jnp.float32)    # (A, N)
    # TODO(synk): Attention class not in the spec; assume context_mask masks
    # padded/special-token scores before the softmax (torchnlp 'general').
    scores = jnp.where(mrow_ref[...] > 0.0, scores, -1e9)

    # masked softmax + attention mix, per batch (B is tiny; unrolled)
    attmix = []
    for b in range(B):
        sc = scores[:, b * S:(b + 1) * S]                           # (A, S)
        sc = sc - jnp.max(sc, axis=-1, keepdims=True)
        e = jnp.exp(sc)
        attw = e / jnp.sum(e, axis=-1, keepdims=True)               # (A, S)
        attmix.append(jnp.dot(attw, mix2d[b * S:(b + 1) * S, :],
                              preferred_element_type=jnp.float32))  # (A, D)
    attmix_all = jnp.concatenate(attmix, axis=0)                    # (B*A, D)

    # output projection: tanh([mix, q_lin] @ w_out^T); query half precomputed
    att_seq = jnp.tanh(
        jnp.dot(attmix_all, woutm_ref[...], preferred_element_type=jnp.float32)
        + jnp.concatenate([qout_ref[...]] * B, axis=0))             # (B*A, D)

    # ---- classifier: flatten each batch to (1, A*D), then ONE matmul -------
    rows = []
    for b in range(B):
        rows.append(jnp.concatenate(
            [att_seq[b * A + a:b * A + a + 1, :] for a in range(A)], axis=1))
    att_flat = jnp.concatenate(rows, axis=0)                        # (B, A*D)
    logits = (jnp.dot(att_flat, wcls_ref[...],
                      preferred_element_type=jnp.float32)
              + bcls_ref[...])                                      # (B, C)

    logits = logits - jnp.max(logits, axis=-1, keepdims=True)
    out_ref[...] = logits - jnp.log(jnp.sum(jnp.exp(logits),
                                            axis=-1, keepdims=True))


# --------------------------------------------------------------------------
# One-time parameter preparation (outside the per-call hot path)
# --------------------------------------------------------------------------
def prepare_params(params):
    D = params["w_in"].shape[0]
    K = params["w_conv"].shape[2]
    sw = params["skip_weight"].astype(jnp.float32)

    # (K*D, D): row block k holds w_conv[:, :, k].T scaled by skip_weight; the
    # centre block additionally carries (1 - skip_weight) * I, so a single
    # im2col matmul produces the full skip-mix (pre-mask) directly.
    w_stack = jnp.transpose(params["w_conv"], (2, 1, 0)).reshape(K * D, D)
    w_mix = sw * w_stack
    centre = (K // 2) * D
    w_mix = w_mix.at[centre:centre + D, :].add(
        (1.0 - sw) * jnp.eye(D, dtype=jnp.float32))
    b_mix = (sw * params["b_conv"])[None, :]                        # (1, D)

    q_lin = params["attention_vecs"][0] @ params["w_in"].T          # (A, D)
    w_out_T = params["w_out"].T                                     # (2D, D)
    q_out = q_lin @ w_out_T[D:, :]                                  # (A, D)

    return dict(
        w_mix=w_mix.astype(jnp.float32),
        b_mix=b_mix.astype(jnp.float32),
        q_lin=q_lin.astype(jnp.float32),
        w_out_mix=w_out_T[:D, :].astype(jnp.float32),               # (D, D)
        q_out=q_out.astype(jnp.float32),
        w_cls_T=params["w_cls"].T.astype(jnp.float32),              # (A*D, C)
        b_cls=params["b_cls"][None, :].astype(jnp.float32),         # (1, C)
    )


# --------------------------------------------------------------------------
# Wrapper: single grid-less pallas_call
# --------------------------------------------------------------------------
@jax.jit
def conv_att_classifier(x, regular_tokens_mask, prep):
    B, S, D = x.shape
    A = prep["q_lin"].shape[0]
    C = prep["w_cls_T"].shape[1]
    K = prep["w_mix"].shape[0] // D
    m = regular_tokens_mask.astype(jnp.float32)

    flops = 2 * (B * S * K * D * D + A * D * B * S + B * A * S * D
                 + B * A * D * D + B * A * D * C)
    transcendentals = B * A * S + B * A * D + B * C + B
    bytes_accessed = 4 * (x.size + 2 * B * S + K * D * D + D + 3 * A * D
                          + D * D + A * D * C + C + B * C)

    return pl.pallas_call(
        conv_att_kernel,
        out_shape=jax.ShapeDtypeStruct((B, C), jnp.float32),
        cost_estimate=pl.CostEstimate(flops=flops,
                                      transcendentals=transcendentals,
                                      bytes_accessed=bytes_accessed),
    )(
        x,
        m.reshape(B * S, 1),                     # row-oriented token mask
        m.reshape(1, B * S),                     # lane-oriented token mask
        prep["w_mix"], prep["b_mix"],
        prep["q_lin"], prep["w_out_mix"], prep["q_out"],
        prep["w_cls_T"], prep["b_cls"],
    )


# --------------------------------------------------------------------------
# Parameters (raw, PyTorch-layout)
# --------------------------------------------------------------------------
def init_params(key, D, C, A):
    ks = jax.random.split(key, 8)
    n = lambda k, shape, s: (s * jax.random.normal(k, shape)).astype(jnp.float32)
    return dict(
        w_conv=n(ks[0], (D, D, 5), 0.08),          # Conv1d weight (out, in, k)
        b_conv=n(ks[1], (D,), 0.05),               # Conv1d bias
        skip_weight=jnp.asarray(0.1, jnp.float32), # skip_weight parameter
        w_in=n(ks[2], (D, D), 0.1),                # attend.linear_in.weight  (no bias)
        w_out=n(ks[3], (D, 2 * D), 0.1),           # attend.linear_out.weight (no bias)
        attention_vecs=n(ks[4], (1, A, D), 0.3),   # attention_vecs
        w_cls=n(ks[5], (C, A * D), 0.1),           # classifier.weight
        b_cls=n(ks[6], (C,), 0.1),                 # classifier.bias
    )


# --------------------------------------------------------------------------
# Pure-JAX reference (original formulation, raw params) for correctness check
# --------------------------------------------------------------------------
def forward_ref(x, regular_tokens_mask, params):
    B, S, D = x.shape
    A = params["attention_vecs"].shape[1]
    m2d = regular_tokens_mask.astype(jnp.float32)        # (B, S)
    m = m2d[..., None]                                   # (B, S, 1)
    inp = x * m

    # Conv1d(D, D, k=5, padding=2) along the sequence axis
    xp = jnp.pad(inp, ((0, 0), (2, 2), (0, 0)))
    conv = jnp.zeros_like(inp) + params["b_conv"][None, None, :]
    for k in range(5):
        conv = conv + jnp.einsum("bsd,od->bso",
                                 xp[:, k:k + S, :], params["w_conv"][:, :, k])
    conv = conv * m

    sw = params["skip_weight"]
    mix = (1.0 - sw) * inp + sw * conv

    qv = jnp.broadcast_to(params["attention_vecs"], (B, A, D))
    q_lin = jnp.einsum("bad,ed->bae", qv, params["w_in"])
    scores = jnp.einsum("bae,bse->bas", q_lin, mix)
    scores = jnp.where(m2d[:, None, :] > 0.0, scores, -1e9)
    attw = jax.nn.softmax(scores, axis=-1)
    attmix = jnp.einsum("bas,bsd->bad", attw, mix)
    comb = jnp.concatenate([attmix, q_lin], axis=-1)     # (B, A, 2D)
    att_seq = jnp.tanh(jnp.einsum("bak,dk->bad", comb, params["w_out"]))

    logits = att_seq.reshape(B, -1) @ params["w_cls"].T + params["b_cls"]
    return jax.nn.log_softmax(logits, axis=-1)


if __name__ == "__main__":
    # batch=2, seq=8, embedding_dim=32, n_attention_vecs=3, num_classes=4
    B, S, D, A, C = 2, 8, 32, 3, 4
    key = jax.random.PRNGKey(0)
    kx, kp = jax.random.split(key)
    x = jax.random.normal(kx, (B, S, D), jnp.float32)
    regular_tokens_mask = jnp.array([[1, 1, 1, 1, 1, 1, 0, 0],
                                     [1, 1, 1, 1, 1, 0, 0, 0]], jnp.float32)
    params = init_params(kp, D, C, A)
    prep = prepare_params(params)          # one-time parameter folding

    out = jax.block_until_ready(conv_att_classifier(x, regular_tokens_mask, prep))
    ref = jax.block_until_ready(forward_ref(x, regular_tokens_mask, params))

    assert out.shape == (B, C)
    assert bool(jnp.all(jnp.isfinite(out)))
    # log-softmax rows must exponentiate-sum to 1
    assert bool(jnp.allclose(jnp.exp(out).sum(-1), 1.0, atol=1e-4))
    # default (bf16-on-MXU) matmul precision in both kernel and reference,
    # so compare with a correspondingly relaxed tolerance.
    assert bool(jnp.allclose(out, ref, atol=3e-2, rtol=3e-2)), (out, ref)
    print("KERNEL_OK")
</pallas_src>

<mosaic_0001>
module attributes {stable_mosaic.version = 11 : i64} {
  func.func @conv_att_kernel(%arg0: memref<2x8x32xf32, #tpu.memory_space<vmem>>, %arg1: memref<16x1xf32, #tpu.memory_space<vmem>>, %arg2: memref<1x16xf32, #tpu.memory_space<vmem>>, %arg3: memref<160x32xf32, #tpu.memory_space<vmem>>, %arg4: memref<1x32xf32, #tpu.memory_space<vmem>>, %arg5: memref<3x32xf32, #tpu.memory_space<vmem>>, %arg6: memref<32x32xf32, #tpu.memory_space<vmem>>, %arg7: memref<3x32xf32, #tpu.memory_space<vmem>>, %arg8: memref<96x4xf32, #tpu.memory_space<vmem>>, %arg9: memref<1x4xf32, #tpu.memory_space<vmem>>, %arg10: memref<2x4xf32, #tpu.memory_space<vmem>>) attributes {dimension_semantics = [], scalar_prefetch = 0 : i64, scratch_operands = 0 : i64, tpu.core_type = #tpu.core_type<tc>} {
    %c0 = arith.constant 0 : index
    %c0_0 = arith.constant 0 : index
    %0 = vector.load %arg1[%c0, %c0_0] : memref<16x1xf32, #tpu.memory_space<vmem>>, vector<16x1xf32>
    %c0_1 = arith.constant 0 : index
    %c0_2 = arith.constant 0 : index
    %c0_3 = arith.constant 0 : index
    %1 = vector.load %arg0[%c0_1, %c0_2, %c0_3] : memref<2x8x32xf32, #tpu.memory_space<vmem>>, vector<2x8x32xf32>
    %2 = vector.shape_cast %1 : vector<2x8x32xf32> to vector<16x32xf32>
    %3 = vector.broadcast %0 : vector<16x1xf32> to vector<16x32xf32>
    %4 = arith.mulf %2, %3 : vector<16x32xf32>
    %5 = vector.shape_cast %4 : vector<16x32xf32> to vector<2x8x32xf32>
    %cst = arith.constant 0.000000e+00 : f32
    %6 = vector.broadcast %cst : f32 to vector<2x2x32xf32>
    %7 = vector.extract_strided_slice %5 {offsets = [0, 0, 0], sizes = [2, 6, 32], strides = [1, 1, 1]} : vector<2x8x32xf32> to vector<2x6x32xf32>
    %8 = tpu.concatenate %6, %7 in 1 : vector<2x2x32xf32>, vector<2x6x32xf32> -> vector<2x8x32xf32>
    %cst_4 = arith.constant 0.000000e+00 : f32
    %9 = vector.broadcast %cst_4 : f32 to vector<2x1x32xf32>
    %10 = vector.extract_strided_slice %5 {offsets = [0, 0, 0], sizes = [2, 7, 32], strides = [1, 1, 1]} : vector<2x8x32xf32> to vector<2x7x32xf32>
    %11 = tpu.concatenate %9, %10 in 1 : vector<2x1x32xf32>, vector<2x7x32xf32> -> vector<2x8x32xf32>
    %12 = vector.extract_strided_slice %5 {offsets = [0, 1, 0], sizes = [2, 7, 32], strides = [1, 1, 1]} : vector<2x8x32xf32> to vector<2x7x32xf32>
    %cst_5 = arith.constant 0.000000e+00 : f32
    %13 = vector.broadcast %cst_5 : f32 to vector<2x1x32xf32>
    %14 = tpu.concatenate %12, %13 in 1 : vector<2x7x32xf32>, vector<2x1x32xf32> -> vector<2x8x32xf32>
    %15 = vector.extract_strided_slice %5 {offsets = [0, 2, 0], sizes = [2, 6, 32], strides = [1, 1, 1]} : vector<2x8x32xf32> to vector<2x6x32xf32>
    %cst_6 = arith.constant 0.000000e+00 : f32
    %16 = vector.broadcast %cst_6 : f32 to vector<2x2x32xf32>
    %17 = tpu.concatenate %15, %16 in 1 : vector<2x6x32xf32>, vector<2x2x32xf32> -> vector<2x8x32xf32>
    %18 = tpu.concatenate %8, %11, %5, %14, %17 in 2 : vector<2x8x32xf32>, vector<2x8x32xf32>, vector<2x8x32xf32>, vector<2x8x32xf32>, vector<2x8x32xf32> -> vector<2x8x160xf32>
    %19 = vector.shape_cast %18 : vector<2x8x160xf32> to vector<16x160xf32>
    %c0_7 = arith.constant 0 : index
    %c0_8 = arith.constant 0 : index
    %20 = vector.load %arg3[%c0_7, %c0_8] : memref<160x32xf32, #tpu.memory_space<vmem>>, vector<160x32xf32>
    %cst_9 = arith.constant dense<0.000000e+00> : vector<16x32xf32>
    %21 = tpu.matmul %19, %20, %cst_9 {dimension_numbers = #tpu.dot_dimension_numbers<[1], [0], [0], [1], [0, 0, 1, 1], [], []>} : vector<16x160xf32>, vector<160x32xf32>, vector<16x32xf32> -> vector<16x32xf32>
    %c0_10 = arith.constant 0 : index
    %c0_11 = arith.constant 0 : index
    %22 = vector.load %arg4[%c0_10, %c0_11] : memref<1x32xf32, #tpu.memory_space<vmem>>, vector<1x32xf32>
    %23 = vector.broadcast %22 : vector<1x32xf32> to vector<16x32xf32>
    %24 = arith.addf %21, %23 : vector<16x32xf32>
    %25 = vector.broadcast %0 : vector<16x1xf32> to vector<16x32xf32>
    %26 = arith.mulf %24, %25 : vector<16x32xf32>
    %c0_12 = arith.constant 0 : index
    %c0_13 = arith.constant 0 : index
    %27 = vector.load %arg5[%c0_12, %c0_13] : memref<3x32xf32, #tpu.memory_space<vmem>>, vector<3x32xf32>
    %cst_14 = arith.constant dense<0.000000e+00> : vector<3x16xf32>
    %28 = tpu.matmul %27, %26, %cst_14 {dimension_numbers = #tpu.dot_dimension_numbers<[1], [1], [0], [0], [0, 0, 1, 0], [], []>} : vector<3x32xf32>, vector<16x32xf32>, vector<3x16xf32> -> vector<3x16xf32>
    %c0_15 = arith.constant 0 : index
    %c0_16 = arith.constant 0 : index
    %29 = vector.load %arg2[%c0_15, %c0_16] : memref<1x16xf32, #tpu.memory_space<vmem>>, vector<1x16xf32>
    %cst_17 = arith.constant 0.000000e+00 : f32
    %30 = vector.broadcast %cst_17 : f32 to vector<1x16xf32>
    %31 = arith.cmpf ogt, %29, %30 : vector<1x16xf32>
    %cst_18 = arith.constant -1.000000e+09 : f32
    %32 = vector.shape_cast %31 : vector<1x16xi1> to vector<1x16xi1>
    %33 = vector.broadcast %32 : vector<1x16xi1> to vector<3x16xi1>
    %34 = vector.broadcast %cst_18 : f32 to vector<3x16xf32>
    %35 = arith.select %33, %28, %34 : vector<3x16xi1>, vector<3x16xf32>
    %36 = vector.extract_strided_slice %35 {offsets = [0, 0], sizes = [3, 8], strides = [1, 1]} : vector<3x16xf32> to vector<3x8xf32>
    %cst_19 = arith.constant dense<0xFF800000> : vector<3xf32>
    %37 = vector.multi_reduction <maximumf>, %36, %cst_19 [1] : vector<3x8xf32> to vector<3xf32>
    %38 = vector.shape_cast %37 : vector<3xf32> to vector<3x1xf32>
    %39 = vector.broadcast %38 : vector<3x1xf32> to vector<3x8xf32>
    %40 = arith.subf %36, %39 : vector<3x8xf32>
    %41 = math.exp %40 : vector<3x8xf32>
    %cst_20 = arith.constant dense<0.000000e+00> : vector<3xf32>
    %42 = vector.multi_reduction <add>, %41, %cst_20 [1] : vector<3x8xf32> to vector<3xf32>
    %43 = vector.shape_cast %42 : vector<3xf32> to vector<3x1xf32>
    %44 = vector.broadcast %43 : vector<3x1xf32> to vector<3x8xf32>
    %45 = arith.divf %41, %44 : vector<3x8xf32>
    %46 = vector.extract_strided_slice %26 {offsets = [0, 0], sizes = [8, 32], strides = [1, 1]} : vector<16x32xf32> to vector<8x32xf32>
    %cst_21 = arith.constant dense<0.000000e+00> : vector<3x32xf32>
    %47 = tpu.matmul %45, %46, %cst_21 {dimension_numbers = #tpu.dot_dimension_numbers<[1], [0], [0], [1], [0, 0, 1, 1], [], []>} : vector<3x8xf32>, vector<8x32xf32>, vector<3x32xf32> -> vector<3x32xf32>
    %48 = vector.extract_strided_slice %35 {offsets = [0, 8], sizes = [3, 8], strides = [1, 1]} : vector<3x16xf32> to vector<3x8xf32>
    %cst_22 = arith.constant dense<0xFF800000> : vector<3xf32>
    %49 = vector.multi_reduction <maximumf>, %48, %cst_22 [1] : vector<3x8xf32> to vector<3xf32>
    %50 = vector.shape_cast %49 : vector<3xf32> to vector<3x1xf32>
    %51 = vector.broadcast %50 : vector<3x1xf32> to vector<3x8xf32>
    %52 = arith.subf %48, %51 : vector<3x8xf32>
    %53 = math.exp %52 : vector<3x8xf32>
    %cst_23 = arith.constant dense<0.000000e+00> : vector<3xf32>
    %54 = vector.multi_reduction <add>, %53, %cst_23 [1] : vector<3x8xf32> to vector<3xf32>
    %55 = vector.shape_cast %54 : vector<3xf32> to vector<3x1xf32>
    %56 = vector.broadcast %55 : vector<3x1xf32> to vector<3x8xf32>
    %57 = arith.divf %53, %56 : vector<3x8xf32>
    %58 = vector.extract_strided_slice %26 {offsets = [8, 0], sizes = [8, 32], strides = [1, 1]} : vector<16x32xf32> to vector<8x32xf32>
    %cst_24 = arith.constant dense<0.000000e+00> : vector<3x32xf32>
    %59 = tpu.matmul %57, %58, %cst_24 {dimension_numbers = #tpu.dot_dimension_numbers<[1], [0], [0], [1], [0, 0, 1, 1], [], []>} : vector<3x8xf32>, vector<8x32xf32>, vector<3x32xf32> -> vector<3x32xf32>
    %60 = tpu.concatenate %47, %59 in 0 : vector<3x32xf32>, vector<3x32xf32> -> vector<6x32xf32>
    %c0_25 = arith.constant 0 : index
    %c0_26 = arith.constant 0 : index
    %61 = vector.load %arg6[%c0_25, %c0_26] : memref<32x32xf32, #tpu.memory_space<vmem>>, vector<32x32xf32>
    %cst_27 = arith.constant dense<0.000000e+00> : vector<6x32xf32>
    %62 = tpu.matmul %60, %61, %cst_27 {dimension_numbers = #tpu.dot_dimension_numbers<[1], [0], [0], [1], [0, 0, 1, 1], [], []>} : vector<6x32xf32>, vector<32x32xf32>, vector<6x32xf32> -> vector<6x32xf32>
    %c0_28 = arith.constant 0 : index
    %c0_29 = arith.constant 0 : index
    %63 = vector.load %arg7[%c0_28, %c0_29] : memref<3x32xf32, #tpu.memory_space<vmem>>, vector<3x32xf32>
    %64 = tpu.concatenate %63, %63 in 0 : vector<3x32xf32>, vector<3x32xf32> -> vector<6x32xf32>
    %65 = arith.addf %62, %64 : vector<6x32xf32>
    %66 = math.tanh %65 : vector<6x32xf32>
    %67 = vector.extract_strided_slice %66 {offsets = [0, 0], sizes = [1, 32], strides = [1, 1]} : vector<6x32xf32> to vector<1x32xf32>
    %68 = vector.extract_strided_slice %66 {offsets = [1, 0], sizes = [1, 32], strides = [1, 1]} : vector<6x32xf32> to vector<1x32xf32>
    %69 = vector.extract_strided_slice %66 {offsets = [2, 0], sizes = [1, 32], strides = [1, 1]} : vector<6x32xf32> to vector<1x32xf32>
    %70 = tpu.concatenate %67, %68, %69 in 1 : vector<1x32xf32>, vector<1x32xf32>, vector<1x32xf32> -> vector<1x96xf32>
    %71 = vector.extract_strided_slice %66 {offsets = [3, 0], sizes = [1, 32], strides = [1, 1]} : vector<6x32xf32> to vector<1x32xf32>
    %72 = vector.extract_strided_slice %66 {offsets = [4, 0], sizes = [1, 32], strides = [1, 1]} : vector<6x32xf32> to vector<1x32xf32>
    %73 = vector.extract_strided_slice %66 {offsets = [5, 0], sizes = [1, 32], strides = [1, 1]} : vector<6x32xf32> to vector<1x32xf32>
    %74 = tpu.concatenate %71, %72, %73 in 1 : vector<1x32xf32>, vector<1x32xf32>, vector<1x32xf32> -> vector<1x96xf32>
    %75 = tpu.concatenate %70, %74 in 0 : vector<1x96xf32>, vector<1x96xf32> -> vector<2x96xf32>
    %c0_30 = arith.constant 0 : index
    %c0_31 = arith.constant 0 : index
    %76 = vector.load %arg8[%c0_30, %c0_31] : memref<96x4xf32, #tpu.memory_space<vmem>>, vector<96x4xf32>
    %cst_32 = arith.constant dense<0.000000e+00> : vector<2x4xf32>
    %77 = tpu.matmul %75, %76, %cst_32 {dimension_numbers = #tpu.dot_dimension_numbers<[1], [0], [0], [1], [0, 0, 1, 1], [], []>} : vector<2x96xf32>, vector<96x4xf32>, vector<2x4xf32> -> vector<2x4xf32>
    %c0_33 = arith.constant 0 : index
    %c0_34 = arith.constant 0 : index
    %78 = vector.load %arg9[%c0_33, %c0_34] : memref<1x4xf32, #tpu.memory_space<vmem>>, vector<1x4xf32>
    %79 = vector.broadcast %78 : vector<1x4xf32> to vector<2x4xf32>
    %80 = arith.addf %77, %79 : vector<2x4xf32>
    %cst_35 = arith.constant dense<0xFF800000> : vector<2xf32>
    %81 = vector.multi_reduction <maximumf>, %80, %cst_35 [1] : vector<2x4xf32> to vector<2xf32>
    %82 = vector.shape_cast %81 : vector<2xf32> to vector<2x1xf32>
    %83 = vector.broadcast %82 : vector<2x1xf32> to vector<2x4xf32>
    %84 = arith.subf %80, %83 : vector<2x4xf32>
    %85 = math.exp %84 : vector<2x4xf32>
    %cst_36 = arith.constant dense<0.000000e+00> : vector<2xf32>
    %86 = vector.multi_reduction <add>, %85, %cst_36 [1] : vector<2x4xf32> to vector<2xf32>
    %87 = vector.shape_cast %86 : vector<2xf32> to vector<2x1xf32>
    %88 = math.log %87 : vector<2x1xf32>
    %89 = vector.broadcast %88 : vector<2x1xf32> to vector<2x4xf32>
    %90 = arith.subf %84, %89 : vector<2x4xf32>
    %c0_37 = arith.constant 0 : index
    %c0_38 = arith.constant 0 : index
    %91 = vector.load %arg10[%c0_37, %c0_38] : memref<2x4xf32, #tpu.memory_space<vmem>>, vector<2x4xf32>
    tpu.vector_store %arg10[%c0_37, %c0_38], %90 {strides = array<i32>} : memref<2x4xf32, #tpu.memory_space<vmem>>, vector<2x4xf32>,
    return
  }
}

</mosaic_0001>

<llo_original>
// kernel: conv_att_classifier.1
$region0: #{conv_att_classifier.1}
  #allocation0 [shape = 'u32[]', space=smem, size = 0x4, offset = 0x4, fixed_abs, tag = 'smem constant byte address 0x4 - core index']
  #allocation1 [shape = 'u32[144,128]{1,0:T(1,128)}', space=vmem, size = 0x12000, scoped, tag = 'internal scratch']
  %s0 = inlined_call_operand.vmem [shape: f32[2,8,32], index: 0, kind: input, shape index: {}]
  %s1 = inlined_call_operand.vmem [shape: f32[16,1], index: 1, kind: input, shape index: {}]
  %s2 = inlined_call_operand.vmem [shape: f32[1,16], index: 2, kind: input, shape index: {}]
  %s3 = inlined_call_operand.vmem [shape: f32[160,32], index: 3, kind: input, shape index: {}]
  %s4 = inlined_call_operand.vmem [shape: f32[1,32], index: 4, kind: input, shape index: {}]
  %s5 = inlined_call_operand.vmem [shape: f32[3,32], index: 5, kind: input, shape index: {}]
  %s6 = inlined_call_operand.vmem [shape: f32[32,32], index: 6, kind: input, shape index: {}]
  %s7 = inlined_call_operand.vmem [shape: f32[3,32], index: 7, kind: input, shape index: {}]
  %s8 = inlined_call_operand.vmem [shape: f32[96,4], index: 8, kind: input, shape index: {}]
  %s9 = inlined_call_operand.vmem [shape: f32[1,4], index: 9, kind: input, shape index: {}]
  %s10 = inlined_call_operand.hbm [shape: f32[2,4], index: 10, kind: output, shape index: {}]
  %s11 = sld [smem:[#allocation0]]
  $region50: #{conv_att_classifier.1} parent=0
    _
  %s13 = ssub.s32 1, %s11
  %s14 = scalar_select 0, %s13, %s11
  $region1: #{conv_att_classifier.1} parent=0
    #allocation2 [shape = 'u8[1024]{0}', space=vmem, size = 0x400, scoped, tag = 'output window, operand 0, single buffered']
    #allocation3 [shape = 's32[1]{0}', space=sflag, size = 0x4, scoped, tag = 'scoped memory for conv_att_classifier.1']
    %15 = vsyncpa [#allocation3], 0
    // Predicated region
    $region2: #{conv_att_classifier.1} parent=1 // pred_check
      _
    $region3: #{conv_att_classifier.1} parent=1 // pred_check_branch
      %17 = sbr.rel (0) target = $region5
    $region4: #{conv_att_classifier.1} parent=1 // pred_region
      _
    $region5: #{conv_att_classifier.1} parent=1 // pred_fallthru
      _
    // Predicated region
    $region6: #{conv_att_classifier.1} parent=1 // pred_check
      _
    $region7: #{conv_att_classifier.1} parent=1 // pred_check_branch
      %19 = sbr.rel (0) target = $region9
    $region8: #{conv_att_classifier.1} parent=1 // pred_region
      _
    $region9: #{conv_att_classifier.1} parent=1 // pred_fallthru
      _
    // Predicated region
    $region10: #{conv_att_classifier.1} parent=1 // pred_check
      _
    $region11: #{conv_att_classifier.1} parent=1 // pred_check_branch
      %21 = sbr.rel (0) target = $region13
    $region12: #{conv_att_classifier.1} parent=1 // pred_region
      _
    $region13: #{conv_att_classifier.1} parent=1 // pred_fallthru
      _
    // Predicated region
    $region14: #{conv_att_classifier.1} parent=1 // pred_check
      _
    $region15: #{conv_att_classifier.1} parent=1 // pred_check_branch
      %23 = sbr.rel (0) target = $region17
    $region16: #{conv_att_classifier.1} parent=1 // pred_region
      _
    $region17: #{conv_att_classifier.1} parent=1 // pred_fallthru
      _
    // Predicated region
    $region18: #{conv_att_classifier.1} parent=1 // pred_check
      _
    $region19: #{conv_att_classifier.1} parent=1 // pred_check_branch
      %25 = sbr.rel (0) target = $region21
    $region20: #{conv_att_classifier.1} parent=1 // pred_region
      _
    $region21: #{conv_att_classifier.1} parent=1 // pred_fallthru
      _
    // Predicated region
    $region22: #{conv_att_classifier.1} parent=1 // pred_check
      _
    $region23: #{conv_att_classifier.1} parent=1 // pred_check_branch
      %27 = sbr.rel (0) target = $region25
    $region24: #{conv_att_classifier.1} parent=1 // pred_region
      _
    $region25: #{conv_att_classifier.1} parent=1 // pred_fallthru
      _
    // Predicated region
    $region26: #{conv_att_classifier.1} parent=1 // pred_check
      _
    $region27: #{conv_att_classifier.1} parent=1 // pred_check_branch
      %29 = sbr.rel (0) target = $region29
    $region28: #{conv_att_classifier.1} parent=1 // pred_region
      _
    $region29: #{conv_att_classifier.1} parent=1 // pred_fallthru
      _
    // Predicated region
    $region30: #{conv_att_classifier.1} parent=1 // pred_check
      _
    $region31: #{conv_att_classifier.1} parent=1 // pred_check_branch
      %31 = sbr.rel (0) target = $region33
    $region32: #{conv_att_classifier.1} parent=1 // pred_region
      _
    $region33: #{conv_att_classifier.1} parent=1 // pred_fallthru
      _
    // Predicated region
    $region34: #{conv_att_classifier.1} parent=1 // pred_check
      _
    $region35: #{conv_att_classifier.1} parent=1 // pred_check_branch
      %33 = sbr.rel (0) target = $region37
    $region36: #{conv_att_classifier.1} parent=1 // pred_region
      _
    $region37: #{conv_att_classifier.1} parent=1 // pred_fallthru
      _
    // Predicated region
    $region38: #{conv_att_classifier.1} parent=1 // pred_check
      _
    $region39: #{conv_att_classifier.1} parent=1 // pred_check_branch
      %35 = sbr.rel (0) target = $region41
    $region40: #{conv_att_classifier.1} parent=1 // pred_region
      _
    $region41: #{conv_att_classifier.1} parent=1 // pred_fallthru
      _
    %v36 = vld [vmem:[%s1] sm:$0xff]
    %v37 = vld [vmem:[%s1 + $0x8] sm:$0xff]
    %v38 = vld [vmem:[%s0] sm:$0xff]
    %v39 = vld [vmem:[%s0 + $0x8] sm:$0xff]
    %41 = vset.pattern.permute.xlu0 0
    %42 = vperm.xlu0 %41, %v36
    %v43 = vpop.permute.xlu0 %42
    %46 = vset.pattern.permute.xlu0 0
    %47 = vperm.xlu0 %46, %v37
    %v48 = vpop.permute.xlu0 %47
    %v50 = vmul.f32 %v38, %v43
    %v51 = vmul.f32 %v39, %v48
    %v54 = vrot.slane %v50, 6
    %v55 = vrot.slane %v51, 6
    %vm58 = vcmask 1041408
    %v59 = vsel %vm58, 0.0, %v54
    %v60 = vsel %vm58, 0.0, %v55
    %v61 = vrot.slane %v50, 7
    %v62 = vrot.slane %v51, 7
    %vm65 = vcmask 1040384
    %v66 = vsel %vm65, 0.0, %v61
    %v67 = vsel %vm65, 0.0, %v62
    %v68 = vrot.slane %v50, 1
    %v69 = vrot.slane %v51, 1
    %vm72 = vcmask 1046528
    %v73 = vsel %vm72, %v68, 0.0
    %v74 = vsel %vm72, %v69, 0.0
    %v75 = vrot.slane %v50, 2
    %v76 = vrot.slane %v51, 2
    %vm79 = vcmask 1045504
    %v80 = vsel %vm79, %v75, 0.0
    %v81 = vsel %vm79, %v76, 0.0
    %84 = vrot.lane.b32.xlu0 %v66, 32
    %v85 = vpop.permute.xlu0 %84
    %86 = vrot.lane.b32.xlu0 %v67, 32
    %v87 = vpop.permute.xlu0 %86
    %90 = vrot.lane.b32.xlu0 %v50, 64
    %v91 = vpop.permute.xlu0 %90
    %92 = vrot.lane.b32.xlu0 %v51, 64
    %v93 = vpop.permute.xlu0 %92
    %98 = vrot.lane.b32.xlu0 %v73, 96
    %v99 = vpop.permute.xlu0 %98
    %100 = vrot.lane.b32.xlu0 %v74, 96
    %v101 = vpop.permute.xlu0 %100
    %vm104 = vcmask 261120
    %v105 = vsel %vm104, %v59, %v85
    %v106 = vsel %vm104, %v60, %v87
    %vm107 = vcmask 523264
    %v108 = vsel %vm107, %v105, %v91
    %v109 = vsel %vm107, %v106, %v93
    %vm110 = vcmask 785408
    %v111 = vsel %vm110, %v108, %v99
    %v112 = vsel %vm110, %v109, %v101
    %v113 = vld [vmem:[%s3] sm:$0xff]
    %v114 = vld [vmem:[%s3 + $0x8] sm:$0xff]
    %v115 = vld [vmem:[%s3 + $0x10] sm:$0xff]
    %v116 = vld [vmem:[%s3 + $0x18] sm:$0xff]
    %v117 = vld [vmem:[%s3 + $0x20] sm:$0xff]
    %v118 = vld [vmem:[%s3 + $0x28] sm:$0xff]
    %v119 = vld [vmem:[%s3 + $0x30] sm:$0xff]
    %v120 = vld [vmem:[%s3 + $0x38] sm:$0xff]
    %v121 = vld [vmem:[%s3 + $0x40] sm:$0xff]
    %v122 = vld [vmem:[%s3 + $0x48] sm:$0xff]
    %v123 = vld [vmem:[%s3 + $0x50] sm:$0xff]
    %v124 = vld [vmem:[%s3 + $0x58] sm:$0xff]
    %v125 = vld [vmem:[%s3 + $0x60] sm:$0xff]
    %v126 = vld [vmem:[%s3 + $0x68] sm:$0xff]
    %v127 = vld [vmem:[%s3 + $0x70] sm:$0xff]
    %v128 = vld [vmem:[%s3 + $0x78] sm:$0xff]
    %v129 = vld [vmem:[%s3 + $0x80] sm:$0xff]
    %v130 = vld [vmem:[%s3 + $0x88] sm:$0xff]
    %v131 = vld [vmem:[%s3 + $0x90] sm:$0xff]
    %v132 = vld [vmem:[%s3 + $0x98] sm:$0xff]
    %v133 = vld [vmem:[%s4] sm:$0x1]
    %v135 = vlaneseq
    %v136 = vshrl.u32 %v135, 7
    %v137 = vsub.s32 0, %v136
    %v138 = vrot.slane %v133, %v137
    %v141 = vsel %vm104, %v80, 0
    %v144 = vsel %vm104, %v81, 0
    %146 = vmatprep.subr.mxu0 0.0
    %147 = vmatpush1.msra.mxu0 %v128
    %148 = vmatprep.subr.mxu0 0.0
    %149 = vmatpush1.msra.mxu0 %v127
    %150 = vmatprep.subr.mxu0 0.0
    %151 = vmatpush1.msra.mxu0 %v126
    %152 = vmatprep.subr.mxu0 0.0
    %153 = vmatpush1.msra.mxu0 %v125
    %154 = vmatprep.subr.mxu0 0.0
    %155 = vmatpush1.msra.mxu0 %v124
    %156 = vmatprep.subr.mxu0 0.0
    %157 = vmatpush1.msra.mxu0 %v123
    %158 = vmatprep.subr.mxu0 0.0
    %159 = vmatpush1.msra.mxu0 %v122
    %160 = vmatprep.subr.mxu0 0.0
    %161 = vmatpush1.msra.mxu0 %v121
    %162 = vmatprep.subr.mxu0 0.0
    %163 = vmatpush1.msra.mxu0 %v120
    %164 = vmatprep.subr.mxu0 0.0
    %165 = vmatpush1.msra.mxu0 %v119
    %166 = vmatprep.subr.mxu0 0.0
    %167 = vmatpush1.msra.mxu0 %v118
    %168 = vmatprep.subr.mxu0 0.0
    %169 = vmatpush1.msra.mxu0 %v117
    %170 = vmatprep.subr.mxu0 0.0
    %171 = vmatpush1.msra.mxu0 %v116
    %172 = vmatprep.subr.mxu0 0.0
    %173 = vmatpush1.msra.mxu0 %v115
    %174 = vmatprep.subr.mxu0 0.0
    %175 = vmatpush1.msra.mxu0 %v114
    %176 = vmatprep.subr.mxu0 0.0
    %177 = vmatpush1.msra.mxu0 %v113
    %178 = vmatprep.subr.mxu0 0.0
    %179 = vmatpush2.msra.mxu0 0.0
    %180 = vmatprep.subr.mxu0 0.0
    %181 = vmatpush2.msra.mxu0 0.0
    %182 = vmatprep.subr.mxu0 0.0
    %183 = vmatpush2.msra.mxu0 0.0
    %184 = vmatprep.subr.mxu0 0.0
    %185 = vmatpush2.msra.mxu0 0.0
    %186 = vmatprep.subr.mxu0 0.0
    %187 = vmatpush2.msra.mxu0 0.0
    %188 = vmatprep.subr.mxu0 0.0
    %189 = vmatpush2.msra.mxu0 0.0
    %190 = vmatprep.subr.mxu0 0.0
    %191 = vmatpush2.msra.mxu0 0.0
    %192 = vmatprep.subr.mxu0 0.0
    %193 = vmatpush2.msra.mxu0 0.0
    %194 = vmatprep.subr.mxu0 0.0
    %195 = vmatpush2.msra.mxu0 0.0
    %196 = vmatprep.subr.mxu0 0.0
    %197 = vmatpush2.msra.mxu0 0.0
    %198 = vmatprep.subr.mxu0 0.0
    %199 = vmatpush2.msra.mxu0 0.0
    %200 = vmatprep.subr.mxu0 0.0
    %201 = vmatpush2.msra.mxu0 0.0
    %202 = vmatprep.subr.mxu0 0.0
    %203 = vmatpush2.msra.mxu0 %v132
    %204 = vmatprep.subr.mxu0 0.0
    %205 = vmatpush2.msra.mxu0 %v131
    %206 = vmatprep.subr.mxu0 0.0
    %207 = vmatpush2.msra.mxu0 %v130
    %208 = vmatprep.subr.mxu0 0.0
    %209 = vmatpush2.msra.mxu0 %v129
    %210 = vmatprep.mubr.f32.mxu0 %v141
    %211 = vmatmul.mubr.f32.gmra.mxu0 %v111
    %v212 = vpop.f32.mrf.mxu0
    %v213 = vadd.f32 %v138, %v212
    %v214 = vpop.f32.mrf.mxu0
    %215 = vmatprep.mubr.f32.mxu0 %v144
    %216 = vmatmul.mubr.f32.gmra.mxu0 %v112
    %v217 = vpop.f32.mrf.mxu0
    %v218 = vadd.f32 %v138, %v217
    %v219 = vpop.f32.mrf.mxu0
    %220 = vdwg.mxu0
    %v221 = vmul.f32 %v213, %v43
    %v222 = vmul.f32 %v218, %v48
    %v223 = vld [vmem:[%s5] sm:$0x7]
    %v225 = vsel %vm104, %v223, 0
    %v228 = vsel %vm104, %v221, 0
    %v231 = vsel %vm104, %v222, 0
    %233 = vmatprep.subr.mxu0 0.0
    %234 = vmatpush1.xpose.msra.mxu0 0.0
    %235 = vmatprep.subr.mxu0 0.0
    %236 = vmatpush1.xpose.msra.mxu0 0.0
    %237 = vmatprep.subr.mxu0 0.0
    %238 = vmatpush1.xpose.msra.mxu0 0.0
    %239 = vmatprep.subr.mxu0 0.0
    %240 = vmatpush1.xpose.msra.mxu0 0.0
    %241 = vmatprep.subr.mxu0 0.0
    %242 = vmatpush1.xpose.msra.mxu0 0.0
    %243 = vmatprep.subr.mxu0 0.0
    %244 = vmatpush1.xpose.msra.mxu0 0.0
    %245 = vmatprep.subr.mxu0 0.0
    %246 = vmatpush1.xpose.msra.mxu0 0.0
    %247 = vmatprep.subr.mxu0 0.0
    %248 = vmatpush1.xpose.msra.mxu0 0.0
    %249 = vmatprep.subr.mxu0 0.0
    %250 = vmatpush1.xpose.msra.mxu0 0.0
    %251 = vmatprep.subr.mxu0 0.0
    %252 = vmatpush1.xpose.msra.mxu0 0.0
    %253 = vmatprep.subr.mxu0 0.0
    %254 = vmatpush1.xpose.msra.mxu0 0.0
    %255 = vmatprep.subr.mxu0 0.0
    %256 = vmatpush1.xpose.msra.mxu0 0.0
    %257 = vmatprep.subr.mxu0 0.0
    %258 = vmatpush1.xpose.msra.mxu0 0.0
    %259 = vmatprep.subr.mxu0 0.0
    %260 = vmatpush1.xpose.msra.mxu0 0.0
    %261 = vmatprep.subr.mxu0 0.0
    %262 = vmatpush1.xpose.msra.mxu0 %v231
    %263 = vmatprep.subr.mxu0 0.0
    %264 = vmatpush1.xpose.msra.mxu0 %v228
    %265 = vmatprep.subr.mxu0 0.0
    %266 = vmatpush2.xpose.msra.mxu0 0.0
    %267 = vmatprep.subr.mxu0 0.0
    %268 = vmatpush2.xpose.msra.mxu0 0.0
    %269 = vmatprep.subr.mxu0 0.0
    %270 = vmatpush2.xpose.msra.mxu0 0.0
    %271 = vmatprep.subr.mxu0 0.0
    %272 = vmatpush2.xpose.msra.mxu0 0.0
    %273 = vmatprep.subr.mxu0 0.0
    %274 = vmatpush2.xpose.msra.mxu0 0.0
    %275 = vmatprep.subr.mxu0 0.0
    %276 = vmatpush2.xpose.msra.mxu0 0.0
    %277 = vmatprep.subr.mxu0 0.0
    %278 = vmatpush2.xpose.msra.mxu0 0.0
    %279 = vmatprep.subr.mxu0 0.0
    %280 = vmatpush2.xpose.msra.mxu0 0.0
    %281 = vmatprep.subr.mxu0 0.0
    %282 = vmatpush2.xpose.msra.mxu0 0.0
    %283 = vmatprep.subr.mxu0 0.0
    %284 = vmatpush2.xpose.msra.mxu0 0.0
    %285 = vmatprep.subr.mxu0 0.0
    %286 = vmatpush2.xpose.msra.mxu0 0.0
    %287 = vmatprep.subr.mxu0 0.0
    %288 = vmatpush2.xpose.msra.mxu0 0.0
    %289 = vmatprep.subr.mxu0 0.0
    %290 = vmatpush2.xpose.msra.mxu0 0.0
    %291 = vmatprep.subr.mxu0 0.0
    %292 = vmatpush2.xpose.msra.mxu0 0.0
    %293 = vmatprep.subr.mxu0 0.0
    %294 = vmatpush2.xpose.msra.mxu0 0.0
    %295 = vmatprep.subr.mxu0 0.0
    %296 = vmatpush2.xpose.msra.mxu0 0.0
    %297 = vmatprep.mubr.f32.mxu0 0.0
    %298 = vmatmul.mubr.f32.gmra.mxu0 %v225
    %v299 = vpop.f32.mrf.mxu0
    %v300 = vadd.f32 0.0, %v299
    %v301 = vpop.f32.mrf.mxu0
    %302 = vdwg.mxu0
    %v303 = vld [vmem:[%s2] sm:$0x1]
    %vm304 = vcmp.gt.f32.partialorder %v303, 0.0
    %v305 = vsel %vm304, 1, 0
    %v306 = vlaneseq
    %v307 = vshrl.u32 %v306, 7
    %v308 = vsub.s32 0, %v307
    %v309 = vrot.slane %v305, %v308
    %vm310 = vcmp.eq.s32.totalorder %v309, 1
    %v311 = vsel %vm310, %v300, -1e+09
    %vm312 = vcmask 59392
    %v313 = vsel %vm312, %v311, -inf
    %314 = vmax.xlane.f32.xlu0 %v313
    %v315 = vpop.xlane.xlu0 %314
    %v316 = vsub.f32 %v311, %v315
    %v317 = vmul.f32 %v316, 1.442695
    %v318 = vpow.pop %v317
    %v319 = vsel %vm312, %v318, 0.0
    %320 = vadd.xlane.f32.xlu0 %v319
    %v321 = vpop.xlane.xlu0 %320
    %v322 = vrcp.pop %v321
    %v323 = vmul.f32 %v318, %v322
    %vm324 = vcmask 64512
    %v326 = vsel %vm324, %v323, 0
    %328 = vmatprep.subr.mxu0 0.0
    %329 = vmatpush1.msra.mxu0 0.0
    %330 = vmatprep.subr.mxu0 0.0
    %331 = vmatpush1.msra.mxu0 0.0
    %332 = vmatprep.subr.mxu0 0.0
    %333 = vmatpush1.msra.mxu0 0.0
    %334 = vmatprep.subr.mxu0 0.0
    %335 = vmatpush1.msra.mxu0 0.0
    %336 = vmatprep.subr.mxu0 0.0
    %337 = vmatpush1.msra.mxu0 0.0
    %338 = vmatprep.subr.mxu0 0.0
    %339 = vmatpush1.msra.mxu0 0.0
    %340 = vmatprep.subr.mxu0 0.0
    %341 = vmatpush1.msra.mxu0 0.0
    %342 = vmatprep.subr.mxu0 0.0
    %343 = vmatpush1.msra.mxu0 0.0
    %344 = vmatprep.subr.mxu0 0.0
    %345 = vmatpush1.msra.mxu0 0.0
    %346 = vmatprep.subr.mxu0 0.0
    %347 = vmatpush1.msra.mxu0 0.0
    %348 = vmatprep.subr.mxu0 0.0
    %349 = vmatpush1.msra.mxu0 0.0
    %350 = vmatprep.subr.mxu0 0.0
    %351 = vmatpush1.msra.mxu0 0.0
    %352 = vmatprep.subr.mxu0 0.0
    %353 = vmatpush1.msra.mxu0 0.0
    %354 = vmatprep.subr.mxu0 0.0
    %355 = vmatpush1.msra.mxu0 0.0
    %356 = vmatprep.subr.mxu0 0.0
    %357 = vmatpush1.msra.mxu0 0.0
    %358 = vmatprep.subr.mxu0 0.0
    %359 = vmatpush1.msra.mxu0 %v221
    %360 = vmatprep.subr.mxu0 0.0
    %361 = vmatpush2.msra.mxu0 0.0
    %362 = vmatprep.subr.mxu0 0.0
    %363 = vmatpush2.msra.mxu0 0.0
    %364 = vmatprep.subr.mxu0 0.0
    %365 = vmatpush2.msra.mxu0 0.0
    %366 = vmatprep.subr.mxu0 0.0
    %367 = vmatpush2.msra.mxu0 0.0
    %368 = vmatprep.subr.mxu0 0.0
    %369 = vmatpush2.msra.mxu0 0.0
    %370 = vmatprep.subr.mxu0 0.0
    %371 = vmatpush2.msra.mxu0 0.0
    %372 = vmatprep.subr.mxu0 0.0
    %373 = vmatpush2.msra.mxu0 0.0
    %374 = vmatprep.subr.mxu0 0.0
    %375 = vmatpush2.msra.mxu0 0.0
    %376 = vmatprep.subr.mxu0 0.0
    %377 = vmatpush2.msra.mxu0 0.0
    %378 = vmatprep.subr.mxu0 0.0
    %379 = vmatpush2.msra.mxu0 0.0
    %380 = vmatprep.subr.mxu0 0.0
    %381 = vmatpush2.msra.mxu0 0.0
    %382 = vmatprep.subr.mxu0 0.0
    %383 = vmatpush2.msra.mxu0 0.0
    %384 = vmatprep.subr.mxu0 0.0
    %385 = vmatpush2.msra.mxu0 0.0
    %386 = vmatprep.subr.mxu0 0.0
    %387 = vmatpush2.msra.mxu0 0.0
    %388 = vmatprep.subr.mxu0 0.0
    %389 = vmatpush2.msra.mxu0 0.0
    %390 = vmatprep.subr.mxu0 0.0
    %391 = vmatpush2.msra.mxu0 0.0
    %392 = vmatprep.mubr.f32.mxu0 0.0
    %393 = vmatmul.mubr.f32.gmra.mxu0 %v326
    %v394 = vpop.f32.mrf.mxu0
    %v395 = vadd.f32 0.0, %v394
    %v396 = vpop.f32.mrf.mxu0
    %397 = vdwg.mxu0
    %vm398 = vcmask 124992
    %v399 = vsel %vm398, %v311, -inf
    %400 = vmax.xlane.f32.xlu0 %v399
    %v401 = vpop.xlane.xlu0 %400
    %v402 = vsub.f32 %v311, %v401
    %v403 = vmul.f32 %v402, 1.442695
    %v404 = vpow.pop %v403
    %406 = vrot.lane.b32.xlu0 %v404, 120
    %v407 = vpop.permute.xlu0 %406
    %v409 = vsel %vm312, %v407, 0.0
    %410 = vadd.xlane.f32.xlu0 %v409
    %v411 = vpop.xlane.xlu0 %410
    %v412 = vrcp.pop %v411
    %v413 = vmul.f32 %v404, %v412
    %415 = vrot.lane.b32.xlu0 %v413, 120
    %v416 = vpop.permute.xlu0 %415
    %v417 = vsel %vm324, %v416, 0
    %419 = vmatprep.subr.mxu0 0.0
    %420 = vmatpush1.msra.mxu0 0.0
    %421 = vmatprep.subr.mxu0 0.0
    %422 = vmatpush1.msra.mxu0 0.0
    %423 = vmatprep.subr.mxu0 0.0
    %424 = vmatpush1.msra.mxu0 0.0
    %425 = vmatprep.subr.mxu0 0.0
    %426 = vmatpush1.msra.mxu0 0.0
    %427 = vmatprep.subr.mxu0 0.0
    %428 = vmatpush1.msra.mxu0 0.0
    %429 = vmatprep.subr.mxu0 0.0
    %430 = vmatpush1.msra.mxu0 0.0
    %431 = vmatprep.subr.mxu0 0.0
    %432 = vmatpush1.msra.mxu0 0.0
    %433 = vmatprep.subr.mxu0 0.0
    %434 = vmatpush1.msra.mxu0 0.0
    %435 = vmatprep.subr.mxu0 0.0
    %436 = vmatpush1.msra.mxu0 0.0
    %437 = vmatprep.subr.mxu0 0.0
    %438 = vmatpush1.msra.mxu0 0.0
    %439 = vmatprep.subr.mxu0 0.0
    %440 = vmatpush1.msra.mxu0 0.0
    %441 = vmatprep.subr.mxu0 0.0
    %442 = vmatpush1.msra.mxu0 0.0
    %443 = vmatprep.subr.mxu0 0.0
    %444 = vmatpush1.msra.mxu0 0.0
    %445 = vmatprep.subr.mxu0 0.0
    %446 = vmatpush1.msra.mxu0 0.0
    %447 = vmatprep.subr.mxu0 0.0
    %448 = vmatpush1.msra.mxu0 0.0
    %449 = vmatprep.subr.mxu0 0.0
    %450 = vmatpush1.msra.mxu0 %v222
    %451 = vmatprep.subr.mxu0 0.0
    %452 = vmatpush2.msra.mxu0 0.0
    %453 = vmatprep.subr.mxu0 0.0
    %454 = vmatpush2.msra.mxu0 0.0
    %455 = vmatprep.subr.mxu0 0.0
    %456 = vmatpush2.msra.mxu0 0.0
    %457 = vmatprep.subr.mxu0 0.0
    %458 = vmatpush2.msra.mxu0 0.0
    %459 = vmatprep.subr.mxu0 0.0
    %460 = vmatpush2.msra.mxu0 0.0
    %461 = vmatprep.subr.mxu0 0.0
    %462 = vmatpush2.msra.mxu0 0.0
    %463 = vmatprep.subr.mxu0 0.0
    %464 = vmatpush2.msra.mxu0 0.0
    %465 = vmatprep.subr.mxu0 0.0
    %466 = vmatpush2.msra.mxu0 0.0
    %467 = vmatprep.subr.mxu0 0.0
    %468 = vmatpush2.msra.mxu0 0.0
    %469 = vmatprep.subr.mxu0 0.0
    %470 = vmatpush2.msra.mxu0 0.0
    %471 = vmatprep.subr.mxu0 0.0
    %472 = vmatpush2.msra.mxu0 0.0
    %473 = vmatprep.subr.mxu0 0.0
    %474 = vmatpush2.msra.mxu0 0.0
    %475 = vmatprep.subr.mxu0 0.0
    %476 = vmatpush2.msra.mxu0 0.0
    %477 = vmatprep.subr.mxu0 0.0
    %478 = vmatpush2.msra.mxu0 0.0
    %479 = vmatprep.subr.mxu0 0.0
    %480 = vmatpush2.msra.mxu0 0.0
    %481 = vmatprep.subr.mxu0 0.0
    %482 = vmatpush2.msra.mxu0 0.0
    %483 = vmatprep.mubr.f32.mxu0 0.0
    %484 = vmatmul.mubr.f32.gmra.mxu0 %v417
    %v485 = vpop.f32.mrf.mxu0
    %v486 = vadd.f32 0.0, %v485
    %v487 = vpop.f32.mrf.mxu0
    %488 = vdwg.mxu0
    %v490 = vrot.slane %v486, 5
    %vm492 = vcmask 1042432
    %v493 = vsel %vm492, %v395, %v490
    %v494 = vld [vmem:[%s6] sm:$0xff]
    %v495 = vld [vmem:[%s6 + $0x8] sm:$0xff]
    %v496 = vld [vmem:[%s6 + $0x10] sm:$0xff]
    %v497 = vld [vmem:[%s6 + $0x18] sm:$0xff]
    %v498 = vld [vmem:[%s7] sm:$0x7]
    %v500 = vrot.slane %v498, 5
    %v502 = vsel %vm492, %v498, %v500
    %v504 = vsel %vm104, %v493, 0
    %506 = vmatprep.subr.mxu0 0.0
    %507 = vmatpush1.msra.mxu0 0.0
    %508 = vmatprep.subr.mxu0 0.0
    %509 = vmatpush1.msra.mxu0 0.0
    %510 = vmatprep.subr.mxu0 0.0
    %511 = vmatpush1.msra.mxu0 0.0
    %512 = vmatprep.subr.mxu0 0.0
    %513 = vmatpush1.msra.mxu0 0.0
    %514 = vmatprep.subr.mxu0 0.0
    %515 = vmatpush1.msra.mxu0 0.0
    %516 = vmatprep.subr.mxu0 0.0
    %517 = vmatpush1.msra.mxu0 0.0
    %518 = vmatprep.subr.mxu0 0.0
    %519 = vmatpush1.msra.mxu0 0.0
    %520 = vmatprep.subr.mxu0 0.0
    %521 = vmatpush1.msra.mxu0 0.0
    %522 = vmatprep.subr.mxu0 0.0
    %523 = vmatpush1.msra.mxu0 0.0
    %524 = vmatprep.subr.mxu0 0.0
    %525 = vmatpush1.msra.mxu0 0.0
    %526 = vmatprep.subr.mxu0 0.0
    %527 = vmatpush1.msra.mxu0 0.0
    %528 = vmatprep.subr.mxu0 0.0
    %529 = vmatpush1.msra.mxu0 0.0
    %530 = vmatprep.subr.mxu0 0.0
    %531 = vmatpush1.msra.mxu0 %v497
    %532 = vmatprep.subr.mxu0 0.0
    %533 = vmatpush1.msra.mxu0 %v496
    %534 = vmatprep.subr.mxu0 0.0
    %535 = vmatpush1.msra.mxu0 %v495
    %536 = vmatprep.subr.mxu0 0.0
    %537 = vmatpush1.msra.mxu0 %v494
    %538 = vmatprep.subr.mxu0 0.0
    %539 = vmatpush2.msra.mxu0 0.0
    %540 = vmatprep.subr.mxu0 0.0
    %541 = vmatpush2.msra.mxu0 0.0
    %542 = vmatprep.subr.mxu0 0.0
    %543 = vmatpush2.msra.mxu0 0.0
    %544 = vmatprep.subr.mxu0 0.0
    %545 = vmatpush2.msra.mxu0 0.0
    %546 = vmatprep.subr.mxu0 0.0
    %547 = vmatpush2.msra.mxu0 0.0
    %548 = vmatprep.subr.mxu0 0.0
    %549 = vmatpush2.msra.mxu0 0.0
    %550 = vmatprep.subr.mxu0 0.0
    %551 = vmatpush2.msra.mxu0 0.0
    %552 = vmatprep.subr.mxu0 0.0
    %553 = vmatpush2.msra.mxu0 0.0
    %554 = vmatprep.subr.mxu0 0.0
    %555 = vmatpush2.msra.mxu0 0.0
    %556 = vmatprep.subr.mxu0 0.0
    %557 = vmatpush2.msra.mxu0 0.0
    %558 = vmatprep.subr.mxu0 0.0
    %559 = vmatpush2.msra.mxu0 0.0
    %560 = vmatprep.subr.mxu0 0.0
    %561 = vmatpush2.msra.mxu0 0.0
    %562 = vmatprep.subr.mxu0 0.0
    %563 = vmatpush2.msra.mxu0 0.0
    %564 = vmatprep.subr.mxu0 0.0
    %565 = vmatpush2.msra.mxu0 0.0
    %566 = vmatprep.subr.mxu0 0.0
    %567 = vmatpush2.msra.mxu0 0.0
    %568 = vmatprep.subr.mxu0 0.0
    %569 = vmatpush2.msra.mxu0 0.0
    %570 = vmatprep.mubr.f32.mxu0 0.0
    %571 = vmatmul.mubr.f32.gmra.mxu0 %v504
    %v572 = vpop.f32.mrf.mxu0
    %v573 = vadd.f32 %v502, %v572
    %v574 = vpop.f32.mrf.mxu0
    %575 = vdwg.mxu0
    %v576 = vtanh.pop %v573
    %v578 = vrot.slane %v576, 1
    %579 = vrot.lane.b32.xlu0 %v578, 32
    %v580 = vpop.permute.xlu0 %579
    %v582 = vrot.slane %v576, 2
    %583 = vrot.lane.b32.xlu0 %v582, 64
    %v584 = vpop.permute.xlu0 %583
    %v586 = vsel %vm104, %v576, %v580
    %v587 = vsel %vm107, %v586, %v584
    %v589 = vrot.slane %v587, 2
    %v591 = vsel %vm65, %v587, %v589
    %v592 = vld [vmem:[%s8] sm:$0xff]
    %v593 = vld [vmem:[%s8 + $0x8] sm:$0xff]
    %v594 = vld [vmem:[%s8 + $0x10] sm:$0xff]
    %v595 = vld [vmem:[%s8 + $0x18] sm:$0xff]
    %v596 = vld [vmem:[%s8 + $0x20] sm:$0xff]
    %v597 = vld [vmem:[%s8 + $0x28] sm:$0xff]
    %v598 = vld [vmem:[%s8 + $0x30] sm:$0xff]
    %v599 = vld [vmem:[%s8 + $0x38] sm:$0xff]
    %v600 = vld [vmem:[%s8 + $0x40] sm:$0xff]
    %v601 = vld [vmem:[%s8 + $0x48] sm:$0xff]
    %v602 = vld [vmem:[%s8 + $0x50] sm:$0xff]
    %v603 = vld [vmem:[%s8 + $0x58] sm:$0xff]
    %v604 = vld [vmem:[%s9] sm:$0x1]
    %v606 = vlaneseq
    %v607 = vshrl.u32 %v606, 7
    %v608 = vsub.s32 0, %v607
    %v609 = vrot.slane %v604, %v608
    %v612 = vsel %vm110, %v591, 0
    %614 = vmatprep.subr.mxu0 0.0
    %615 = vmatpush1.msra.mxu0 0.0
    %616 = vmatprep.subr.mxu0 0.0
    %617 = vmatpush1.msra.mxu0 0.0
    %618 = vmatprep.subr.mxu0 0.0
    %619 = vmatpush1.msra.mxu0 0.0
    %620 = vmatprep.subr.mxu0 0.0
    %621 = vmatpush1.msra.mxu0 0.0
    %622 = vmatprep.subr.mxu0 0.0
    %623 = vmatpush1.msra.mxu0 %v603
    %624 = vmatprep.subr.mxu0 0.0
    %625 = vmatpush1.msra.mxu0 %v602
    %626 = vmatprep.subr.mxu0 0.0
    %627 = vmatpush1.msra.mxu0 %v601
    %628 = vmatprep.subr.mxu0 0.0
    %629 = vmatpush1.msra.mxu0 %v600
    %630 = vmatprep.subr.mxu0 0.0
    %631 = vmatpush1.msra.mxu0 %v599
    %632 = vmatprep.subr.mxu0 0.0
    %633 = vmatpush1.msra.mxu0 %v598
    %634 = vmatprep.subr.mxu0 0.0
    %635 = vmatpush1.msra.mxu0 %v597
    %636 = vmatprep.subr.mxu0 0.0
    %637 = vmatpush1.msra.mxu0 %v596
    %638 = vmatprep.subr.mxu0 0.0
    %639 = vmatpush1.msra.mxu0 %v595
    %640 = vmatprep.subr.mxu0 0.0
    %641 = vmatpush1.msra.mxu0 %v594
    %642 = vmatprep.subr.mxu0 0.0
    %643 = vmatpush1.msra.mxu0 %v593
    %644 = vmatprep.subr.mxu0 0.0
    %645 = vmatpush1.msra.mxu0 %v592
    %646 = vmatprep.subr.mxu0 0.0
    %647 = vmatpush2.msra.mxu0 0.0
    %648 = vmatprep.subr.mxu0 0.0
    %649 = vmatpush2.msra.mxu0 0.0
    %650 = vmatprep.subr.mxu0 0.0
    %651 = vmatpush2.msra.mxu0 0.0
    %652 = vmatprep.subr.mxu0 0.0
    %653 = vmatpush2.msra.mxu0 0.0
    %654 = vmatprep.subr.mxu0 0.0
    %655 = vmatpush2.msra.mxu0 0.0
    %656 = vmatprep.subr.mxu0 0.0
    %657 = vmatpush2.msra.mxu0 0.0
    %658 = vmatprep.subr.mxu0 0.0
    %659 = vmatpush2.msra.mxu0 0.0
    %660 = vmatprep.subr.mxu0 0.0
    %661 = vmatpush2.msra.mxu0 0.0
    %662 = vmatprep.subr.mxu0 0.0
    %663 = vmatpush2.msra.mxu0 0.0
    %664 = vmatprep.subr.mxu0 0.0
    %665 = vmatpush2.msra.mxu0 0.0
    %666 = vmatprep.subr.mxu0 0.0
    %667 = vmatpush2.msra.mxu0 0.0
    %668 = vmatprep.subr.mxu0 0.0
    %669 = vmatpush2.msra.mxu0 0.0
    %670 = vmatprep.subr.mxu0 0.0
    %671 = vmatpush2.msra.mxu0 0.0
    %672 = vmatprep.subr.mxu0 0.0
    %673 = vmatpush2.msra.mxu0 0.0
    %674 = vmatprep.subr.mxu0 0.0
    %675 = vmatpush2.msra.mxu0 0.0
    %676 = vmatprep.subr.mxu0 0.0
    %677 = vmatpush2.msra.mxu0 0.0
    %678 = vmatprep.mubr.f32.mxu0 0.0
    %679 = vmatmul.mubr.f32.gmra.mxu0 %v612
    %v680 = vpop.f32.mrf.mxu0
    %v681 = vadd.f32 %v609, %v680
    %v682 = vpop.f32.mrf.mxu0
    %683 = vdwg.mxu0
    %vm684 = vcmask 25600
    %v685 = vsel %vm684, %v681, -inf
    %686 = vmax.xlane.f32.xlu0 %v685
    %v687 = vpop.xlane.xlu0 %686
    %v688 = vsub.f32 %v681, %v687
    %v689 = vmul.f32 %v688, 1.442695
    %v690 = vpow.pop %v689
    %v691 = vsel %vm684, %v690, 0.0
    %692 = vadd.xlane.f32.xlu0 %v691
    %v693 = vpop.xlane.xlu0 %692
    %v694 = vlog2.pop %v693
    %v695 = vmul.f32 %v694, 0.6931472
    %v696 = vsub.f32 %v688, %v695
    %697 = vst.msk [vmem:[#allocation2] sm:$0x3] %vm684, %v696
    // Predicated region
    $region42: #{conv_att_classifier.1} parent=1 // pred_check
      _
    $region43: #{conv_att_classifier.1} parent=1 // pred_check_branch
      %699 = sbr.rel (0) target = $region45
    $region44: #{conv_att_classifier.1} parent=1 // pred_region
      %s701 = ssub.s32 32, 32
      %702 = vsyncadd [#allocation3], %s701
      %s704 = sshll.u32 [#allocation2], 4
      %s705 = int_to_ptr.vmem [resolvable:$true] %s704
      %707 = dma.vmem_to_hbm [thread:$0]  %s705, 32, %s10, [#allocation3]
    $region45: #{conv_att_classifier.1} parent=1 // pred_fallthru
      _
    // Predicated region
    $region46: #{conv_att_classifier.1} parent=1 // pred_check
      _
    $region47: #{conv_att_classifier.1} parent=1 // pred_check_branch
      %709 = sbr.rel (0) target = $region49
    $region48: #{conv_att_classifier.1} parent=1 // pred_region
      %710 = dma.done [#allocation3], 32
    $region49: #{conv_att_classifier.1} parent=1 // pred_fallthru
      _
    %711 = vsyncpa [#allocation3], 1

</llo_original>
